<compile_context>
chip_gen: v6e
topology: v6e:2x2x1
jax: 0.10.0
libtpu: 0.0.40
codegen_flags: <defaults>
</compile_context>

<pallas_src>
import functools
import numpy as np
import jax
import jax.numpy as jnp
from jax.experimental import pallas as pl
from jax.experimental.pallas import tpu as pltpu

# ---- static config (synthetic, small) --------------------------------------
NUM_TARGET_LEVEL0 = 4
NUM_TARGET_LEVEL1 = 6
NUM_LABELS = NUM_TARGET_LEVEL0 + NUM_TARGET_LEVEL1   # 10
HIDDEN_SIZE = 256        # transformer hidden size (config.hidden_size)
NUM_FEAT = 128           # tabular feature width (num_feat)
L0_HIDDEN = 256          # l0 Linear(num_feat, 256)
L0_OUT = 64              # l0 Linear(256, 64)
BN_EPS = 1e-5
FC_DROPOUT = [0.3]       # -> num_dropout == 1
CAT_DIM = HIDDEN_SIZE + L0_HIDDEN   # 512: K of the single fused fc dot
MAX_TILE_B = 1024        # cap keeps footprint ~8 MiB (v5e 16 MiB scoped VMEM)


def _round_up(x, m):
    return (x + m - 1) // m * m


def _pick_tile_b(B):
    """Batch tile: multiple of 16 (bf16 packing), >=2 grid steps for mid/large
    batches (v7x 2-TC sharding of the 'parallel' axis), capped at MAX_TILE_B
    (overhead amortization + v5e scoped-VMEM headroom)."""
    if B <= 16:
        return _round_up(B, 8)                    # tiny batch: one exact block
    Bp = _round_up(B, 16)
    if Bp <= 2 * MAX_TILE_B:
        return _round_up((Bp + 1) // 2, 16)       # exactly 2 steps
    return MAX_TILE_B


# ---- Pallas kernel: whole head, 2 MXU dots, narrow lane-masked output -------
def head_kernel(cls_ref, feat_ref, w1_ref, shift1_ref, wfc_ref, bfc_ref, out_ref):
    # Inputs arrive as f32; cast to bf16 in-kernel (no wrapper cast pass).
    feat_b = feat_ref[...].astype(jnp.bfloat16)
    # l0 Linear + folded BatchNorm(eval): h = feat @ w1' + shift1
    h = jnp.dot(feat_b, w1_ref[...],
                preferred_element_type=jnp.float32) + shift1_ref[...]
    # SiLU in f32 (EUP/VPU; f32 is also correct on v5e which lacks bf16 VPU)
    h = h * jax.nn.sigmoid(h)
    # Single K=512 fc dot on concat([cls, h]); second l0 Linear is pre-folded
    # into wfc:  out = [cls, h] @ [wfc_cls ; w2@wfc_z] + (b2@wfc_z + bfc)
    cat = jnp.concatenate(
        [cls_ref[...].astype(jnp.bfloat16), h.astype(jnp.bfloat16)], axis=1)
    out = jnp.dot(cat, wfc_ref[...],
                  preferred_element_type=jnp.float32) + bfc_ref[...]
    out_ref[...] = out.astype(out_ref.dtype)


@functools.partial(jax.jit, static_argnames=("tile_b",))
def _head(cls_f32, feat_f32, fused, *, tile_b):
    B = cls_f32.shape[0]
    grid = (pl.cdiv(B, tile_b),)   # partial last block: OOB rows masked on write

    def row_spec(f):
        return pl.BlockSpec((tile_b, f), lambda i: (i, 0))

    def const_spec(r, c):
        return pl.BlockSpec((r, c), lambda i: (0, 0))   # weights stay VMEM-resident

    return pl.pallas_call(
        head_kernel,
        out_shape=jax.ShapeDtypeStruct((B, NUM_LABELS), jnp.float32),
        grid=grid,
        in_specs=[
            row_spec(HIDDEN_SIZE),                 # cls tile (f32)
            row_spec(NUM_FEAT),                    # feat tile (f32)
            const_spec(NUM_FEAT, L0_HIDDEN),       # w1 (BN-folded, bf16)
            const_spec(1, L0_HIDDEN),              # shift1 (f32)
            const_spec(CAT_DIM, NUM_LABELS),       # stacked fc weight (bf16)
            const_spec(1, NUM_LABELS),             # fused fc bias (f32)
        ],
        out_specs=row_spec(NUM_LABELS),            # narrow direct output
        compiler_params=pltpu.CompilerParams(
            dimension_semantics=("parallel",)),
    )(cls_f32, feat_f32, fused["w1"], fused["shift1"], fused["wfc"], fused["bfc"])


def custom_model_head(cls_feature, feat, fused, tile_b=None):
    """Full head. Returns list of len(FC_DROPOUT) identical eval-mode outputs."""
    B = cls_feature.shape[0]
    if tile_b is None:
        tile_b = _pick_tile_b(B)
    out = _head(cls_feature.astype(jnp.float32), feat.astype(jnp.float32),
                fused, tile_b=tile_b)
    # eval-mode dropouts are identity -> all num_dropout heads are identical
    return [out for _ in range(len(FC_DROPOUT))]


# ---- parameters -------------------------------------------------------------
def init_params(key):
    """Raw PyTorch-equivalent parameters (f32)."""
    std = 0.02  # config.initializer_range
    ks = jax.random.split(key, 8)
    w1 = std * jax.random.normal(ks[0], (NUM_FEAT, L0_HIDDEN), jnp.float32)
    b1 = std * jax.random.normal(ks[1], (1, L0_HIDDEN), jnp.float32)
    w2 = std * jax.random.normal(ks[2], (L0_HIDDEN, L0_OUT), jnp.float32)
    b2 = std * jax.random.normal(ks[3], (1, L0_OUT), jnp.float32)
    wfc = std * jax.random.normal(ks[4], (HIDDEN_SIZE + L0_OUT, NUM_LABELS),
                                  jnp.float32)
    bfc = std * jax.random.normal(ks[5], (1, NUM_LABELS), jnp.float32)
    gamma = 1.0 + 0.1 * jax.random.normal(ks[6], (1, L0_HIDDEN), jnp.float32)
    beta = 0.1 * jax.random.normal(ks[7], (1, L0_HIDDEN), jnp.float32)
    running_mean = jnp.zeros((1, L0_HIDDEN), jnp.float32)
    running_var = jnp.ones((1, L0_HIDDEN), jnp.float32)
    return dict(w1=w1, b1=b1, w2=w2, b2=b2, wfc=wfc, bfc=bfc,
                gamma=gamma, beta=beta,
                running_mean=running_mean, running_var=running_var)


def fuse_params(p):
    """One-time algebraic folds + fc-weight stacking + bf16 weight cast."""
    bn_scale = p["gamma"] * jax.lax.rsqrt(p["running_var"] + BN_EPS)
    bn_shift = p["beta"] - p["running_mean"] * bn_scale
    w1_f = p["w1"] * bn_scale                       # fold BN scale into Linear
    shift1 = p["b1"] * bn_scale + bn_shift          # fold bias + BN shift
    wfc_cls = p["wfc"][:HIDDEN_SIZE]                # (256, 10)
    wfc_z = p["wfc"][HIDDEN_SIZE:]                  # (64, 10)
    wfc_h = p["w2"] @ wfc_z                         # fold 2nd l0 Linear into fc
    wfc = jnp.concatenate([wfc_cls, wfc_h], axis=0)  # (512, 10) stacked weight
    bfc = p["b2"] @ wfc_z + p["bfc"]                # (1, 10)
    return dict(
        w1=w1_f.astype(jnp.bfloat16),
        shift1=shift1,                              # f32 (added to f32 acc)
        wfc=wfc.astype(jnp.bfloat16),
        bfc=bfc,                                    # f32
    )


# ---- references -------------------------------------------------------------
def reference_head_f32(cls_feature, feat, p):
    """Exact f32 PyTorch eval-mode forward (no folds, no bf16)."""
    bn_scale = p["gamma"] * jax.lax.rsqrt(p["running_var"] + BN_EPS)
    bn_shift = p["beta"] - p["running_mean"] * bn_scale
    h = feat @ p["w1"] + p["b1"]
    h = h * bn_scale + bn_shift
    h = h * jax.nn.sigmoid(h)
    z = h @ p["w2"] + p["b2"]
    cat = jnp.concatenate([cls_feature, z], axis=1)
    return cat @ p["wfc"] + p["bfc"]


def reference_head_bf16(cls_feature, feat, fused):
    """Pure-JAX mirror of the kernel's folded / bf16-streamed math."""
    h = jnp.dot(feat.astype(jnp.bfloat16), fused["w1"],
                preferred_element_type=jnp.float32) + fused["shift1"]
    h = h * jax.nn.sigmoid(h)
    cat = jnp.concatenate(
        [cls_feature.astype(jnp.bfloat16), h.astype(jnp.bfloat16)], axis=1)
    return jnp.dot(cat, fused["wfc"],
                   preferred_element_type=jnp.float32) + fused["bfc"]


if __name__ == "__main__":
    key = jax.random.PRNGKey(0)
    k_cls, k_feat, k_par, k_cls2, k_feat2 = jax.random.split(key, 5)

    raw = init_params(k_par)
    fused = jax.tree_util.tree_map(jax.block_until_ready, fuse_params(raw))

    # --- small exact-tile case ------------------------------------------------
    B = 8
    # CLS embedding from the (external) transformer backbone: (B, hidden_size)
    cls_feature = jax.random.normal(k_cls, (B, HIDDEN_SIZE), jnp.float32)
    # tabular features: (B, num_feat)
    feat = jax.random.normal(k_feat, (B, NUM_FEAT), jnp.float32)

    outputs = custom_model_head(cls_feature, feat, fused)
    outputs = [jax.block_until_ready(o) for o in outputs]
    assert len(outputs) == len(FC_DROPOUT)
    assert outputs[0].shape == (B, NUM_LABELS)

    # Tight check vs a reference mirroring the kernel's bf16/folded math.
    ref_bf16 = reference_head_bf16(cls_feature, feat, fused)
    np.testing.assert_allclose(np.asarray(outputs[0]), np.asarray(ref_bf16),
                               rtol=2e-3, atol=2e-3)
    # Semantics check vs the exact f32 PyTorch eval-mode forward
    # (tolerance accounts for bf16 weight/activation streaming).
    ref_f32 = reference_head_f32(cls_feature, feat, raw)
    np.testing.assert_allclose(np.asarray(outputs[0]), np.asarray(ref_f32),
                               rtol=5e-2, atol=5e-2)

    # --- mid-size case: 2 grid steps + masked partial last tile ---------------
    B2 = 300
    cls2 = jax.random.normal(k_cls2, (B2, HIDDEN_SIZE), jnp.float32)
    feat2 = jax.random.normal(k_feat2, (B2, NUM_FEAT), jnp.float32)
    out2 = jax.block_until_ready(custom_model_head(cls2, feat2, fused)[0])
    assert out2.shape == (B2, NUM_LABELS)
    ref2 = reference_head_bf16(cls2, feat2, fused)
    np.testing.assert_allclose(np.asarray(out2), np.asarray(ref2),
                               rtol=2e-3, atol=2e-3)

    print("KERNEL_OK")
</pallas_src>

<mosaic_0001>
module attributes {stable_mosaic.version = 11 : i64} {
  func.func @head_kernel(%arg0: i32, %arg1: memref<8x256xf32, #tpu.memory_space<vmem>>, %arg2: memref<8x128xf32, #tpu.memory_space<vmem>>, %arg3: memref<128x256xbf16, #tpu.memory_space<vmem>>, %arg4: memref<1x256xf32, #tpu.memory_space<vmem>>, %arg5: memref<512x10xbf16, #tpu.memory_space<vmem>>, %arg6: memref<1x10xf32, #tpu.memory_space<vmem>>, %arg7: memref<8x10xf32, #tpu.memory_space<vmem>>) attributes {dimension_semantics = [#tpu.dimension_semantics<parallel>], iteration_bounds = array<i64: 1>, scalar_prefetch = 0 : i64, scratch_operands = 0 : i64, tpu.core_type = #tpu.core_type<tc>, window_params = [{transform_indices = @transform_0, window_bounds = array<i64: 8, 256>}, {transform_indices = @transform_1, window_bounds = array<i64: 8, 128>}, {pipeline_mode = #tpu.pipeline_mode<synchronous>, transform_indices = @transform_2, window_bounds = array<i64: 128, 256>}, {pipeline_mode = #tpu.pipeline_mode<synchronous>, transform_indices = @transform_3, window_bounds = array<i64: 1, 256>}, {pipeline_mode = #tpu.pipeline_mode<synchronous>, transform_indices = @transform_4, window_bounds = array<i64: 512, 10>}, {pipeline_mode = #tpu.pipeline_mode<synchronous>, transform_indices = @transform_5, window_bounds = array<i64: 1, 10>}, {transform_indices = @transform_6, window_bounds = array<i64: 8, 10>}]} {
    %c0 = arith.constant 0 : index
    %c0_0 = arith.constant 0 : index
    %0 = vector.load %arg2[%c0, %c0_0] : memref<8x128xf32, #tpu.memory_space<vmem>>, vector<8x128xf32>
    %1 = arith.truncf %0 : vector<8x128xf32> to vector<8x128xbf16>
    %c0_1 = arith.constant 0 : index
    %c0_2 = arith.constant 0 : index
    %2 = vector.load %arg3[%c0_1, %c0_2] : memref<128x256xbf16, #tpu.memory_space<vmem>>, vector<128x256xbf16>
    %cst = arith.constant dense<0.000000e+00> : vector<8x256xf32>
    %3 = tpu.matmul %1, %2, %cst {dimension_numbers = #tpu.dot_dimension_numbers<[1], [0], [0], [1], [0, 0, 1, 1], [], []>} : vector<8x128xbf16>, vector<128x256xbf16>, vector<8x256xf32> -> vector<8x256xf32>
    %c0_3 = arith.constant 0 : index
    %c0_4 = arith.constant 0 : index
    %4 = vector.load %arg4[%c0_3, %c0_4] : memref<1x256xf32, #tpu.memory_space<vmem>>, vector<1x256xf32>
    %5 = vector.broadcast %4 : vector<1x256xf32> to vector<8x256xf32>
    %6 = arith.addf %3, %5 : vector<8x256xf32>
    %7 = arith.negf %6 : vector<8x256xf32>
    %8 = math.exp %7 : vector<8x256xf32>
    %cst_5 = arith.constant 1.000000e+00 : f32
    %9 = vector.broadcast %cst_5 : f32 to vector<8x256xf32>
    %10 = arith.addf %9, %8 : vector<8x256xf32>
    %11 = arith.divf %9, %10 : vector<8x256xf32>
    %12 = arith.mulf %6, %11 : vector<8x256xf32>
    %c0_6 = arith.constant 0 : index
    %c0_7 = arith.constant 0 : index
    %13 = vector.load %arg1[%c0_6, %c0_7] : memref<8x256xf32, #tpu.memory_space<vmem>>, vector<8x256xf32>
    %14 = arith.truncf %13 : vector<8x256xf32> to vector<8x256xbf16>
    %15 = arith.truncf %12 : vector<8x256xf32> to vector<8x256xbf16>
    %16 = tpu.concatenate %14, %15 in 1 : vector<8x256xbf16>, vector<8x256xbf16> -> vector<8x512xbf16>
    %c0_8 = arith.constant 0 : index
    %c0_9 = arith.constant 0 : index
    %17 = vector.load %arg5[%c0_8, %c0_9] : memref<512x10xbf16, #tpu.memory_space<vmem>>, vector<512x10xbf16>
    %cst_10 = arith.constant dense<0.000000e+00> : vector<8x10xf32>
    %18 = tpu.matmul %16, %17, %cst_10 {dimension_numbers = #tpu.dot_dimension_numbers<[1], [0], [0], [1], [0, 0, 1, 1], [], []>} : vector<8x512xbf16>, vector<512x10xbf16>, vector<8x10xf32> -> vector<8x10xf32>
    %c0_11 = arith.constant 0 : index
    %c0_12 = arith.constant 0 : index
    %19 = vector.load %arg6[%c0_11, %c0_12] : memref<1x10xf32, #tpu.memory_space<vmem>>, vector<1x10xf32>
    %20 = vector.broadcast %19 : vector<1x10xf32> to vector<8x10xf32>
    %21 = arith.addf %18, %20 : vector<8x10xf32>
    %c0_13 = arith.constant 0 : index
    %c0_14 = arith.constant 0 : index
    %22 = vector.load %arg7[%c0_13, %c0_14] : memref<8x10xf32, #tpu.memory_space<vmem>>, vector<8x10xf32>
    tpu.vector_store %arg7[%c0_13, %c0_14], %21 {strides = array<i32>} : memref<8x10xf32, #tpu.memory_space<vmem>>, vector<8x10xf32>,
    return
  }
  func.func @transform_0(%arg0: i32) -> (i32, i32) {
    %c0_i32 = arith.constant 0 : i32
    %c0_i32_0 = arith.constant 0 : i32
    return %arg0, %c0_i32 : i32, i32
  }
  func.func @transform_1(%arg0: i32) -> (i32, i32) {
    %c0_i32 = arith.constant 0 : i32
    %c0_i32_0 = arith.constant 0 : i32
    return %arg0, %c0_i32 : i32, i32
  }
  func.func @transform_2(%arg0: i32) -> (i32, i32) {
    %c0_i32 = arith.constant 0 : i32
    %c0_i32_0 = arith.constant 0 : i32
    %c0_i32_1 = arith.constant 0 : i32
    return %c0_i32, %c0_i32_0 : i32, i32
  }
  func.func @transform_3(%arg0: i32) -> (i32, i32) {
    %c0_i32 = arith.constant 0 : i32
    %c0_i32_0 = arith.constant 0 : i32
    %c0_i32_1 = arith.constant 0 : i32
    return %c0_i32, %c0_i32_0 : i32, i32
  }
  func.func @transform_4(%arg0: i32) -> (i32, i32) {
    %c0_i32 = arith.constant 0 : i32
    %c0_i32_0 = arith.constant 0 : i32
    %c0_i32_1 = arith.constant 0 : i32
    return %c0_i32, %c0_i32_0 : i32, i32
  }
  func.func @transform_5(%arg0: i32) -> (i32, i32) {
    %c0_i32 = arith.constant 0 : i32
    %c0_i32_0 = arith.constant 0 : i32
    %c0_i32_1 = arith.constant 0 : i32
    return %c0_i32, %c0_i32_0 : i32, i32
  }
  func.func @transform_6(%arg0: i32) -> (i32, i32) {
    %c0_i32 = arith.constant 0 : i32
    %c0_i32_0 = arith.constant 0 : i32
    return %arg0, %c0_i32 : i32, i32
  }
}

</mosaic_0001>

<llo_original>
// kernel: _head.1
$region0: #{_head.1}
  #allocation0 [shape = 'u32[]', space=smem, size = 0x4, offset = 0x4, fixed_abs, tag = 'smem constant byte address 0x4 - core index']
  #allocation1 [shape = 'u32[144,128]{1,0:T(1,128)}', space=vmem, size = 0x12000, scoped, tag = 'internal scratch']
  %s0 = inlined_call_operand.vmem [shape: f32[8,256], index: 0, kind: input, shape index: {}]
  %s1 = inlined_call_operand.vmem [shape: f32[8,128], index: 1, kind: input, shape index: {}]
  %s2 = inlined_call_operand.vmem [shape: bf16[128,256], index: 2, kind: input, shape index: {}]
  %s3 = inlined_call_operand.vmem [shape: f32[1,256], index: 3, kind: input, shape index: {}]
  %s4 = inlined_call_operand.vmem [shape: bf16[512,10], index: 4, kind: input, shape index: {}]
  %s5 = inlined_call_operand.vmem [shape: f32[1,10], index: 5, kind: input, shape index: {}]
  %s6 = inlined_call_operand.hbm [shape: f32[8,10], index: 6, kind: output, shape index: {}]
  %s7 = sld [smem:[#allocation0]]
  $region34: #{_head.1} parent=0
    _
  %s9 = ssub.s32 1, %s7
  %s10 = scalar_select 0, %s9, %s7
  $region1: #{_head.1} parent=0
    #allocation2 [shape = 'u8[4096]{0}', space=vmem, size = 0x1000, scoped, tag = 'output window, operand 0, single buffered']
    #allocation3 [shape = 's32[1]{0}', space=sflag, size = 0x4, scoped, tag = 'scoped memory for _head.1']
    %11 = vsyncpa [#allocation3], 0
    // Predicated region
    $region2: #{_head.1} parent=1 // pred_check
      _
    $region3: #{_head.1} parent=1 // pred_check_branch
      %13 = sbr.rel (0) target = $region5
    $region4: #{_head.1} parent=1 // pred_region
      _
    $region5: #{_head.1} parent=1 // pred_fallthru
      _
    // Predicated region
    $region6: #{_head.1} parent=1 // pred_check
      _
    $region7: #{_head.1} parent=1 // pred_check_branch
      %15 = sbr.rel (0) target = $region9
    $region8: #{_head.1} parent=1 // pred_region
      _
    $region9: #{_head.1} parent=1 // pred_fallthru
      _
    // Predicated region
    $region10: #{_head.1} parent=1 // pred_check
      _
    $region11: #{_head.1} parent=1 // pred_check_branch
      %17 = sbr.rel (0) target = $region13
    $region12: #{_head.1} parent=1 // pred_region
      _
    $region13: #{_head.1} parent=1 // pred_fallthru
      _
    // Predicated region
    $region14: #{_head.1} parent=1 // pred_check
      _
    $region15: #{_head.1} parent=1 // pred_check_branch
      %19 = sbr.rel (0) target = $region17
    $region16: #{_head.1} parent=1 // pred_region
      _
    $region17: #{_head.1} parent=1 // pred_fallthru
      _
    // Predicated region
    $region18: #{_head.1} parent=1 // pred_check
      _
    $region19: #{_head.1} parent=1 // pred_check_branch
      %21 = sbr.rel (0) target = $region21
    $region20: #{_head.1} parent=1 // pred_region
      _
    $region21: #{_head.1} parent=1 // pred_fallthru
      _
    // Predicated region
    $region22: #{_head.1} parent=1 // pred_check
      _
    $region23: #{_head.1} parent=1 // pred_check_branch
      %23 = sbr.rel (0) target = $region25
    $region24: #{_head.1} parent=1 // pred_region
      _
    $region25: #{_head.1} parent=1 // pred_fallthru
      _
    %v25 = vld [vmem:[%s1] sm:$0xff]
    %v26 = vpack.c.bf16 %v25, %v25
    %v27 = vld [vmem:[%s2] sm:$0xff]
    %v28 = vld [vmem:[%s2 + $0x8] sm:$0xff]
    %v29 = vld [vmem:[%s2 + $0x10] sm:$0xff]
    %v30 = vld [vmem:[%s2 + $0x18] sm:$0xff]
    %v31 = vld [vmem:[%s2 + $0x20] sm:$0xff]
    %v32 = vld [vmem:[%s2 + $0x28] sm:$0xff]
    %v33 = vld [vmem:[%s2 + $0x30] sm:$0xff]
    %v34 = vld [vmem:[%s2 + $0x38] sm:$0xff]
    %v35 = vld [vmem:[%s2 + $0x40] sm:$0xff]
    %v36 = vld [vmem:[%s2 + $0x48] sm:$0xff]
    %v37 = vld [vmem:[%s2 + $0x50] sm:$0xff]
    %v38 = vld [vmem:[%s2 + $0x58] sm:$0xff]
    %v39 = vld [vmem:[%s2 + $0x60] sm:$0xff]
    %v40 = vld [vmem:[%s2 + $0x68] sm:$0xff]
    %v41 = vld [vmem:[%s2 + $0x70] sm:$0xff]
    %v42 = vld [vmem:[%s2 + $0x78] sm:$0xff]
    %v43 = vld [vmem:[%s3] sm:$0x3]
    %v45 = vlaneseq
    %v46 = vshrl.u32 %v45, 7
    %v47 = vsub.s32 0, %v46
    %v48 = vrot.slane %v43, %v47
    %v49 = vlaneseq
    %v50 = vshrl.u32 %v49, 7
    %v51 = vsub.s32 1, %v50
    %v52 = vrot.slane %v43, %v51
    %v71 = vunpack.c.l.b16 %v27
    %v72 = vunpack.c.h.b16 %v27
    %v73 = vunpack.c.l.b16 %v28
    %v74 = vunpack.c.h.b16 %v28
    %v75 = vunpack.c.l.b16 %v29
    %v76 = vunpack.c.h.b16 %v29
    %v77 = vunpack.c.l.b16 %v30
    %v78 = vunpack.c.h.b16 %v30
    %v79 = vunpack.c.l.b16 %v31
    %v80 = vunpack.c.h.b16 %v31
    %v81 = vunpack.c.l.b16 %v32
    %v82 = vunpack.c.h.b16 %v32
    %v83 = vunpack.c.l.b16 %v33
    %v84 = vunpack.c.h.b16 %v33
    %v85 = vunpack.c.l.b16 %v34
    %v86 = vunpack.c.h.b16 %v34
    %v87 = vunpack.c.l.b16 %v35
    %v88 = vunpack.c.h.b16 %v35
    %v89 = vunpack.c.l.b16 %v36
    %v90 = vunpack.c.h.b16 %v36
    %v91 = vunpack.c.l.b16 %v37
    %v92 = vunpack.c.h.b16 %v37
    %v93 = vunpack.c.l.b16 %v38
    %v94 = vunpack.c.h.b16 %v38
    %v95 = vunpack.c.l.b16 %v39
    %v96 = vunpack.c.h.b16 %v39
    %v97 = vunpack.c.l.b16 %v40
    %v98 = vunpack.c.h.b16 %v40
    %v99 = vunpack.c.l.b16 %v41
    %v100 = vunpack.c.h.b16 %v41
    %v101 = vunpack.c.l.b16 %v42
    %v102 = vunpack.c.h.b16 %v42
    %v103 = vpack.c.b16 %v73, %v71
    %v104 = vpack.c.b16 %v74, %v72
    %v105 = vpack.c.b16 %v77, %v75
    %v106 = vpack.c.b16 %v78, %v76
    %v107 = vpack.c.b16 %v81, %v79
    %v108 = vpack.c.b16 %v82, %v80
    %v109 = vpack.c.b16 %v85, %v83
    %v110 = vpack.c.b16 %v86, %v84
    %v111 = vpack.c.b16 %v89, %v87
    %v112 = vpack.c.b16 %v90, %v88
    %v113 = vpack.c.b16 %v93, %v91
    %v114 = vpack.c.b16 %v94, %v92
    %v115 = vpack.c.b16 %v97, %v95
    %v116 = vpack.c.b16 %v98, %v96
    %v117 = vpack.c.b16 %v101, %v99
    %v118 = vpack.c.b16 %v102, %v100
    %135 = vmatprep.subr.bf16.mxu0 %v118
    %136 = vmatpush1.bf16.msra.mxu0 %v117
    %137 = vmatprep.subr.bf16.mxu0 %v116
    %138 = vmatpush1.bf16.msra.mxu0 %v115
    %139 = vmatprep.subr.bf16.mxu0 %v114
    %140 = vmatpush1.bf16.msra.mxu0 %v113
    %141 = vmatprep.subr.bf16.mxu0 %v112
    %142 = vmatpush1.bf16.msra.mxu0 %v111
    %143 = vmatprep.subr.bf16.mxu0 %v110
    %144 = vmatpush1.bf16.msra.mxu0 %v109
    %145 = vmatprep.subr.bf16.mxu0 %v108
    %146 = vmatpush1.bf16.msra.mxu0 %v107
    %147 = vmatprep.subr.bf16.mxu0 %v106
    %148 = vmatpush1.bf16.msra.mxu0 %v105
    %149 = vmatprep.subr.bf16.mxu0 %v104
    %150 = vmatpush1.bf16.msra.mxu0 %v103
    %151 = vmatprep.subr.bf16.mxu0 0
    %152 = vmatpush2.bf16.msra.mxu0 0
    %153 = vmatprep.subr.bf16.mxu0 0
    %154 = vmatpush2.bf16.msra.mxu0 0
    %155 = vmatprep.subr.bf16.mxu0 0
    %156 = vmatpush2.bf16.msra.mxu0 0
    %157 = vmatprep.subr.bf16.mxu0 0
    %158 = vmatpush2.bf16.msra.mxu0 0
    %159 = vmatprep.subr.bf16.mxu0 0
    %160 = vmatpush2.bf16.msra.mxu0 0
    %161 = vmatprep.subr.bf16.mxu0 0
    %162 = vmatpush2.bf16.msra.mxu0 0
    %163 = vmatprep.subr.bf16.mxu0 0
    %164 = vmatpush2.bf16.msra.mxu0 0
    %165 = vmatprep.subr.bf16.mxu0 0
    %166 = vmatpush2.bf16.msra.mxu0 0
    %167 = vmatprep.mubr.bf16.mxu0 0
    %168 = vmatmul.mubr.bf16.gmra.mxu0 %v26
    %v169 = vpop.f32.mrf.mxu0
    %v170 = vadd.f32 %v48, %v169
    %v171 = vpop.f32.mrf.mxu0
    %v172 = vadd.f32 %v52, %v171
    %v173 = vpop.f32.mrf.mxu0
    %v174 = vpop.f32.mrf.mxu0
    %175 = vdwg.mxu0
    %v176 = vxor.u32 %v170, 2147483648
    %v177 = vxor.u32 %v172, 2147483648
    %v178 = vmul.f32 %v176, 1.442695
    %v179 = vpow.pop %v178
    %v180 = vmul.f32 %v177, 1.442695
    %v181 = vpow.pop %v180
    %v182 = vadd.f32 %v179, 1.0
    %v183 = vadd.f32 %v181, 1.0
    %v184 = vrcp.pop %v182
    %v185 = vmul.f32 1.0, %v184
    %v186 = vrcp.pop %v183
    %v187 = vmul.f32 1.0, %v186
    %v188 = vmul.f32 %v170, %v185
    %v189 = vmul.f32 %v172, %v187
    %v190 = vld [vmem:[%s0] sm:$0xff]
    %v191 = vld [vmem:[%s0 + $0x8] sm:$0xff]
    %v192 = vpack.c.bf16 %v190, %v190
    %v193 = vpack.c.bf16 %v191, %v191
    %v194 = vpack.c.bf16 %v188, %v188
    %v195 = vpack.c.bf16 %v189, %v189
    %v196 = vld [vmem:[%s4] sm:$0xf]
    %v197 = vld [vmem:[%s4 + $0x4] sm:$0xf]
    %v198 = vld [vmem:[%s4 + $0x8] sm:$0xf]
    %v199 = vld [vmem:[%s4 + $0xc] sm:$0xf]
    %v200 = vld [vmem:[%s4 + $0x10] sm:$0xf]
    %v201 = vld [vmem:[%s4 + $0x14] sm:$0xf]
    %v202 = vld [vmem:[%s4 + $0x18] sm:$0xf]
    %v203 = vld [vmem:[%s4 + $0x1c] sm:$0xf]
    %v204 = vld [vmem:[%s4 + $0x20] sm:$0xf]
    %v205 = vld [vmem:[%s4 + $0x24] sm:$0xf]
    %v206 = vld [vmem:[%s4 + $0x28] sm:$0xf]
    %v207 = vld [vmem:[%s4 + $0x2c] sm:$0xf]
    %v208 = vld [vmem:[%s4 + $0x30] sm:$0xf]
    %v209 = vld [vmem:[%s4 + $0x34] sm:$0xf]
    %v210 = vld [vmem:[%s4 + $0x38] sm:$0xf]
    %v211 = vld [vmem:[%s4 + $0x3c] sm:$0xf]
    %v212 = vld [vmem:[%s4 + $0x40] sm:$0xf]
    %v213 = vld [vmem:[%s4 + $0x44] sm:$0xf]
    %v214 = vld [vmem:[%s4 + $0x48] sm:$0xf]
    %v215 = vld [vmem:[%s4 + $0x4c] sm:$0xf]
    %v216 = vld [vmem:[%s4 + $0x50] sm:$0xf]
    %v217 = vld [vmem:[%s4 + $0x54] sm:$0xf]
    %v218 = vld [vmem:[%s4 + $0x58] sm:$0xf]
    %v219 = vld [vmem:[%s4 + $0x5c] sm:$0xf]
    %v220 = vld [vmem:[%s4 + $0x60] sm:$0xf]
    %v221 = vld [vmem:[%s4 + $0x64] sm:$0xf]
    %v222 = vld [vmem:[%s4 + $0x68] sm:$0xf]
    %v223 = vld [vmem:[%s4 + $0x6c] sm:$0xf]
    %v224 = vld [vmem:[%s4 + $0x70] sm:$0xf]
    %v225 = vld [vmem:[%s4 + $0x74] sm:$0xf]
    %v226 = vld [vmem:[%s4 + $0x78] sm:$0xf]
    %v227 = vld [vmem:[%s4 + $0x7c] sm:$0xf]
    %v228 = vld [vmem:[%s4 + $0x80] sm:$0xf]
    %v229 = vld [vmem:[%s4 + $0x84] sm:$0xf]
    %v230 = vld [vmem:[%s4 + $0x88] sm:$0xf]
    %v231 = vld [vmem:[%s4 + $0x8c] sm:$0xf]
    %v232 = vld [vmem:[%s4 + $0x90] sm:$0xf]
    %v233 = vld [vmem:[%s4 + $0x94] sm:$0xf]
    %v234 = vld [vmem:[%s4 + $0x98] sm:$0xf]
    %v235 = vld [vmem:[%s4 + $0x9c] sm:$0xf]
    %v236 = vld [vmem:[%s4 + $0xa0] sm:$0xf]
    %v237 = vld [vmem:[%s4 + $0xa4] sm:$0xf]
    %v238 = vld [vmem:[%s4 + $0xa8] sm:$0xf]
    %v239 = vld [vmem:[%s4 + $0xac] sm:$0xf]
    %v240 = vld [vmem:[%s4 + $0xb0] sm:$0xf]
    %v241 = vld [vmem:[%s4 + $0xb4] sm:$0xf]
    %v242 = vld [vmem:[%s4 + $0xb8] sm:$0xf]
    %v243 = vld [vmem:[%s4 + $0xbc] sm:$0xf]
    %v244 = vld [vmem:[%s4 + $0xc0] sm:$0xf]
    %v245 = vld [vmem:[%s4 + $0xc4] sm:$0xf]
    %v246 = vld [vmem:[%s4 + $0xc8] sm:$0xf]
    %v247 = vld [vmem:[%s4 + $0xcc] sm:$0xf]
    %v248 = vld [vmem:[%s4 + $0xd0] sm:$0xf]
    %v249 = vld [vmem:[%s4 + $0xd4] sm:$0xf]
    %v250 = vld [vmem:[%s4 + $0xd8] sm:$0xf]
    %v251 = vld [vmem:[%s4 + $0xdc] sm:$0xf]
    %v252 = vld [vmem:[%s4 + $0xe0] sm:$0xf]
    %v253 = vld [vmem:[%s4 + $0xe4] sm:$0xf]
    %v254 = vld [vmem:[%s4 + $0xe8] sm:$0xf]
    %v255 = vld [vmem:[%s4 + $0xec] sm:$0xf]
    %v256 = vld [vmem:[%s4 + $0xf0] sm:$0xf]
    %v257 = vld [vmem:[%s4 + $0xf4] sm:$0xf]
    %v258 = vld [vmem:[%s4 + $0xf8] sm:$0xf]
    %v259 = vld [vmem:[%s4 + $0xfc] sm:$0xf]
    %v260 = vld [vmem:[%s5] sm:$0x1]
    %v262 = vlaneseq
    %v263 = vshrl.u32 %v262, 7
    %v264 = vsub.s32 0, %v263
    %v265 = vrot.slane %v260, %v264
    %v331 = vunpack.c.l.b16 %v196
    %v332 = vunpack.c.l.b16 %v197
    %v333 = vunpack.c.l.b16 %v198
    %v334 = vunpack.c.l.b16 %v199
    %v335 = vunpack.c.l.b16 %v200
    %v336 = vunpack.c.l.b16 %v201
    %v337 = vunpack.c.l.b16 %v202
    %v338 = vunpack.c.l.b16 %v203
    %v339 = vunpack.c.l.b16 %v204
    %v340 = vunpack.c.l.b16 %v205
    %v341 = vunpack.c.l.b16 %v206
    %v342 = vunpack.c.l.b16 %v207
    %v343 = vunpack.c.l.b16 %v208
    %v344 = vunpack.c.l.b16 %v209
    %v345 = vunpack.c.l.b16 %v210
    %v346 = vunpack.c.l.b16 %v211
    %v347 = vunpack.c.l.b16 %v212
    %v348 = vunpack.c.l.b16 %v213
    %v349 = vunpack.c.l.b16 %v214
    %v350 = vunpack.c.l.b16 %v215
    %v351 = vunpack.c.l.b16 %v216
    %v352 = vunpack.c.l.b16 %v217
    %v353 = vunpack.c.l.b16 %v218
    %v354 = vunpack.c.l.b16 %v219
    %v355 = vunpack.c.l.b16 %v220
    %v356 = vunpack.c.l.b16 %v221
    %v357 = vunpack.c.l.b16 %v222
    %v358 = vunpack.c.l.b16 %v223
    %v359 = vunpack.c.l.b16 %v224
    %v360 = vunpack.c.l.b16 %v225
    %v361 = vunpack.c.l.b16 %v226
    %v362 = vunpack.c.l.b16 %v227
    %v363 = vunpack.c.l.b16 %v228
    %v364 = vunpack.c.l.b16 %v229
    %v365 = vunpack.c.l.b16 %v230
    %v366 = vunpack.c.l.b16 %v231
    %v367 = vunpack.c.l.b16 %v232
    %v368 = vunpack.c.l.b16 %v233
    %v369 = vunpack.c.l.b16 %v234
    %v370 = vunpack.c.l.b16 %v235
    %v371 = vunpack.c.l.b16 %v236
    %v372 = vunpack.c.l.b16 %v237
    %v373 = vunpack.c.l.b16 %v238
    %v374 = vunpack.c.l.b16 %v239
    %v375 = vunpack.c.l.b16 %v240
    %v376 = vunpack.c.l.b16 %v241
    %v377 = vunpack.c.l.b16 %v242
    %v378 = vunpack.c.l.b16 %v243
    %v379 = vunpack.c.l.b16 %v244
    %v380 = vunpack.c.l.b16 %v245
    %v381 = vunpack.c.l.b16 %v246
    %v382 = vunpack.c.l.b16 %v247
    %v383 = vunpack.c.l.b16 %v248
    %v384 = vunpack.c.l.b16 %v249
    %v385 = vunpack.c.l.b16 %v250
    %v386 = vunpack.c.l.b16 %v251
    %v387 = vunpack.c.l.b16 %v252
    %v388 = vunpack.c.l.b16 %v253
    %v389 = vunpack.c.l.b16 %v254
    %v390 = vunpack.c.l.b16 %v255
    %v391 = vunpack.c.l.b16 %v256
    %v392 = vunpack.c.l.b16 %v257
    %v393 = vunpack.c.l.b16 %v258
    %v394 = vunpack.c.l.b16 %v259
    %v395 = vpack.c.b16 %v332, %v331
    %v396 = vpack.c.b16 %v334, %v333
    %v397 = vpack.c.b16 %v336, %v335
    %v398 = vpack.c.b16 %v338, %v337
    %v399 = vpack.c.b16 %v340, %v339
    %v400 = vpack.c.b16 %v342, %v341
    %v401 = vpack.c.b16 %v344, %v343
    %v402 = vpack.c.b16 %v346, %v345
    %v403 = vpack.c.b16 %v348, %v347
    %v404 = vpack.c.b16 %v350, %v349
    %v405 = vpack.c.b16 %v352, %v351
    %v406 = vpack.c.b16 %v354, %v353
    %v407 = vpack.c.b16 %v356, %v355
    %v408 = vpack.c.b16 %v358, %v357
    %v409 = vpack.c.b16 %v360, %v359
    %v410 = vpack.c.b16 %v362, %v361
    %v411 = vpack.c.b16 %v364, %v363
    %v412 = vpack.c.b16 %v366, %v365
    %v413 = vpack.c.b16 %v368, %v367
    %v414 = vpack.c.b16 %v370, %v369
    %v415 = vpack.c.b16 %v372, %v371
    %v416 = vpack.c.b16 %v374, %v373
    %v417 = vpack.c.b16 %v376, %v375
    %v418 = vpack.c.b16 %v378, %v377
    %v419 = vpack.c.b16 %v380, %v379
    %v420 = vpack.c.b16 %v382, %v381
    %v421 = vpack.c.b16 %v384, %v383
    %v422 = vpack.c.b16 %v386, %v385
    %v423 = vpack.c.b16 %v388, %v387
    %v424 = vpack.c.b16 %v390, %v389
    %v425 = vpack.c.b16 %v392, %v391
    %v426 = vpack.c.b16 %v394, %v393
    %459 = vmatprep.subr.bf16.mxu0 0
    %460 = vmatpush1.bf16.msra.mxu0 %v402
    %461 = vmatprep.subr.bf16.mxu0 0
    %462 = vmatpush1.bf16.msra.mxu0 %v401
    %463 = vmatprep.subr.bf16.mxu0 0
    %464 = vmatpush1.bf16.msra.mxu0 %v400
    %465 = vmatprep.subr.bf16.mxu0 0
    %466 = vmatpush1.bf16.msra.mxu0 %v399
    %467 = vmatprep.subr.bf16.mxu0 0
    %468 = vmatpush1.bf16.msra.mxu0 %v398
    %469 = vmatprep.subr.bf16.mxu0 0
    %470 = vmatpush1.bf16.msra.mxu0 %v397
    %471 = vmatprep.subr.bf16.mxu0 0
    %472 = vmatpush1.bf16.msra.mxu0 %v396
    %473 = vmatprep.subr.bf16.mxu0 0
    %474 = vmatpush1.bf16.msra.mxu0 %v395
    %475 = vmatprep.subr.bf16.mxu0 0
    %476 = vmatpush2.bf16.msra.mxu0 %v410
    %477 = vmatprep.subr.bf16.mxu0 0
    %478 = vmatpush2.bf16.msra.mxu0 %v409
    %479 = vmatprep.subr.bf16.mxu0 0
    %480 = vmatpush2.bf16.msra.mxu0 %v408
    %481 = vmatprep.subr.bf16.mxu0 0
    %482 = vmatpush2.bf16.msra.mxu0 %v407
    %483 = vmatprep.subr.bf16.mxu0 0
    %484 = vmatpush2.bf16.msra.mxu0 %v406
    %485 = vmatprep.subr.bf16.mxu0 0
    %486 = vmatpush2.bf16.msra.mxu0 %v405
    %487 = vmatprep.subr.bf16.mxu0 0
    %488 = vmatpush2.bf16.msra.mxu0 %v404
    %489 = vmatprep.subr.bf16.mxu0 0
    %490 = vmatpush2.bf16.msra.mxu0 %v403
    %491 = vmatprep.mubr.bf16.mxu0 %v193
    %492 = vmatmul.mubr.bf16.gmra.mxu0 %v192
    %v493 = vpop.f32.mrf.mxu0
    %v494 = vadd.f32 %v265, %v493
    %v495 = vpop.f32.mrf.mxu0
    %v496 = vpop.f32.mrf.mxu0
    %v497 = vpop.f32.mrf.mxu0
    %498 = vdwg.mxu0
    %499 = vmatprep.subr.bf16.mxu0 0
    %500 = vmatpush1.bf16.msra.mxu0 %v418
    %501 = vmatprep.subr.bf16.mxu0 0
    %502 = vmatpush1.bf16.msra.mxu0 %v417
    %503 = vmatprep.subr.bf16.mxu0 0
    %504 = vmatpush1.bf16.msra.mxu0 %v416
    %505 = vmatprep.subr.bf16.mxu0 0
    %506 = vmatpush1.bf16.msra.mxu0 %v415
    %507 = vmatprep.subr.bf16.mxu0 0
    %508 = vmatpush1.bf16.msra.mxu0 %v414
    %509 = vmatprep.subr.bf16.mxu0 0
    %510 = vmatpush1.bf16.msra.mxu0 %v413
    %511 = vmatprep.subr.bf16.mxu0 0
    %512 = vmatpush1.bf16.msra.mxu0 %v412
    %513 = vmatprep.subr.bf16.mxu0 0
    %514 = vmatpush1.bf16.msra.mxu0 %v411
    %515 = vmatprep.subr.bf16.mxu0 0
    %516 = vmatpush2.bf16.msra.mxu0 %v426
    %517 = vmatprep.subr.bf16.mxu0 0
    %518 = vmatpush2.bf16.msra.mxu0 %v425
    %519 = vmatprep.subr.bf16.mxu0 0
    %520 = vmatpush2.bf16.msra.mxu0 %v424
    %521 = vmatprep.subr.bf16.mxu0 0
    %522 = vmatpush2.bf16.msra.mxu0 %v423
    %523 = vmatprep.subr.bf16.mxu0 0
    %524 = vmatpush2.bf16.msra.mxu0 %v422
    %525 = vmatprep.subr.bf16.mxu0 0
    %526 = vmatpush2.bf16.msra.mxu0 %v421
    %527 = vmatprep.subr.bf16.mxu0 0
    %528 = vmatpush2.bf16.msra.mxu0 %v420
    %529 = vmatprep.subr.bf16.mxu0 0
    %530 = vmatpush2.bf16.msra.mxu0 %v419
    %531 = vmatprep.mubr.bf16.mxu0 %v195
    %532 = vmatmul.mubr.bf16.gmra.mxu0 %v194
    %v533 = vpop.f32.mrf.mxu0
    %v534 = vadd.f32 %v494, %v533
    %v535 = vpop.f32.mrf.mxu0
    %v536 = vpop.f32.mrf.mxu0
    %v537 = vpop.f32.mrf.mxu0
    %538 = vdwg.mxu0
    %vm539 = vcmask 80896
    %540 = vst.msk [vmem:[#allocation2] sm:$0xff] %vm539, %v534
    // Predicated region
    $region26: #{_head.1} parent=1 // pred_check
      _
    $region27: #{_head.1} parent=1 // pred_check_branch
      %542 = sbr.rel (0) target = $region29
    $region28: #{_head.1} parent=1 // pred_region
      %s544 = ssub.s32 128, 128
      %545 = vsyncadd [#allocation3], %s544
      %s547 = sshll.u32 [#allocation2], 4
      %s548 = int_to_ptr.vmem [resolvable:$true] %s547
      %550 = dma.vmem_to_hbm [thread:$0]  %s548, 128, %s6, [#allocation3]
    $region29: #{_head.1} parent=1 // pred_fallthru
      _
    // Predicated region
    $region30: #{_head.1} parent=1 // pred_check
      _
    $region31: #{_head.1} parent=1 // pred_check_branch
      %552 = sbr.rel (0) target = $region33
    $region32: #{_head.1} parent=1 // pred_region
      %553 = dma.done [#allocation3], 128
    $region33: #{_head.1} parent=1 // pred_fallthru
      _
    %554 = vsyncpa [#allocation3], 1

</llo_original>
